<compile_context>
chip_gen: v7x
topology: tpu7x:2x2x1
jax: 0.10.0
libtpu: 0.0.40
codegen_flags: <defaults>
</compile_context>

<pallas_src>
import jax
import jax.numpy as jnp
from jax.experimental import pallas as pl
from jax.experimental.pallas import tpu as pltpu


# Below this channel count a matmul pads the MXU systolic array almost
# entirely with zeros; use VPU broadcast-FMAs instead.
_VPU_CHANNEL_LIMIT = 16


def _restr_kernel(x_ref, w_ref, b_ref, o_ref):
    """One (batch, group, hw-tile) step of the grouped 1x1 conv.

    x_ref: (in_pg, T)      activations, H*W on lanes (lane-dense loads)
    w_ref: (out_pg, in_pg) this group's weights
    b_ref: (out_pg, 1)     this group's bias
    o_ref: (out_pg, T)     output, H*W on lanes (lane-dense stores)
    """
    in_pg = x_ref.shape[0]
    out_pg, tile_hw = o_ref.shape

    x = x_ref[...]
    w = w_ref[...]
    b = b_ref[...].astype(jnp.float32)

    if in_pg <= _VPU_CHANNEL_LIMIT and out_pg <= _VPU_CHANNEL_LIMIT:
        # Unrolled VPU path: out[oc, :] = b[oc] + sum_ic w[oc, ic] * x[ic, :]
        xf = x.astype(jnp.float32)
        wf = w.astype(jnp.float32)
        acc = jnp.broadcast_to(b, (out_pg, tile_hw))
        for ic in range(in_pg):
            # (out_pg, 1) lane-broadcast  *  (1, T) sublane-broadcast
            acc = acc + wf[:, ic:ic + 1] * xf[ic:ic + 1, :]
    else:
        # Realistic channel counts: use the MXU.
        acc = jnp.dot(w, x, preferred_element_type=jnp.float32) + b

    o_ref[...] = acc.astype(o_ref.dtype)


def _pick_hw_tile(hw, target=2048):
    """Largest multiple of 128 that divides hw and is <= target.

    If hw is not a multiple of 128, fall back to a full-extent block (allowed
    by the layout rules) so we never have to pad the activations.
    """
    if hw % 128 != 0:
        return hw
    t = min(target, hw)
    t -= t % 128
    while hw % t != 0:
        t -= 128
    return t


def restr2d_forward(x_nchw, weight, bias, sg, *, hw_tile_target=2048):
    """Grouped 1x1 conv forward (PyTorch Restr2d semantics).

    x_nchw : (N, C_in, H, W)
    weight : (C_out, C_in // sg, 1, 1)   -- PyTorch Conv2d weight layout
    bias   : (C_out,)
    """
    n, c_in, h, w = x_nchw.shape
    c_out = weight.shape[0]
    in_pg = c_in // sg
    out_pg = c_out // sg
    hw = h * w

    # Per-group weight/bias — no zero-padded block-diagonal assembly.
    w_g = weight[:, :, 0, 0].reshape(sg, out_pg, in_pg)     # (sg, out_pg, in_pg)
    b_g = bias.reshape(sg, out_pg, 1)                       # (sg, out_pg, 1)

    # Free contiguous reshape: channels split into (group, channel-in-group),
    # spatial flattened onto the lane axis. No transpose, no pad.
    x4 = x_nchw.reshape(n, sg, in_pg, hw)

    tile_hw = _pick_hw_tile(hw, hw_tile_target)
    hw_tiles = hw // tile_hw
    grid = (n, sg, hw_tiles)

    out4 = pl.pallas_call(
        _restr_kernel,
        out_shape=jax.ShapeDtypeStruct((n, sg, out_pg, hw), x_nchw.dtype),
        grid_spec=pltpu.PrefetchScalarGridSpec(
            num_scalar_prefetch=0,
            grid=grid,
            in_specs=[
                # x: (N, sg, in_pg, HW) -> kernel sees (in_pg, tile_hw)
                pl.BlockSpec((None, None, in_pg, tile_hw),
                             lambda b_, g, t: (b_, g, 0, t)),
                # w_g: (sg, out_pg, in_pg) -> kernel sees (out_pg, in_pg)
                pl.BlockSpec((None, out_pg, in_pg),
                             lambda b_, g, t: (g, 0, 0)),
                # b_g: (sg, out_pg, 1) -> kernel sees (out_pg, 1)
                pl.BlockSpec((None, out_pg, 1),
                             lambda b_, g, t: (g, 0, 0)),
            ],
            out_specs=pl.BlockSpec((None, None, out_pg, tile_hw),
                                   lambda b_, g, t: (b_, g, 0, t)),
        ),
        compiler_params=pltpu.CompilerParams(
            dimension_semantics=("parallel", "parallel", "parallel"),
            vmem_limit_bytes=32 * 1024 * 1024,
        ),
    )(x4, w_g, b_g)

    # Free contiguous reshape back to NCHW ordering (group-major channels,
    # exactly PyTorch grouped-conv output channel order).
    return out4.reshape(n, c_out, h, w)


def _reference_forward(x_nchw, weight, bias, sg):
    """Plain-JAX grouped 1x1 conv reference (for correctness check)."""
    n, c_in, h, w = x_nchw.shape
    c_out = weight.shape[0]
    in_pg = c_in // sg
    out_pg = c_out // sg
    x_g = x_nchw.reshape(n, sg, in_pg, h, w)
    w_g = weight[:, :, 0, 0].reshape(sg, out_pg, in_pg)
    y = jnp.einsum('ngihw,goi->ngohw', x_g, w_g).reshape(n, c_out, h, w)
    return y + bias.reshape(1, c_out, 1, 1)


if __name__ == "__main__":
    # Module config: in_channels=8, sg=2 -> out_channels=4, kernel (1,1)
    in_channels = 8
    sg = 2
    out_channels = in_channels // sg
    in_per_group = in_channels // sg

    key = jax.random.PRNGKey(0)
    kx, kw, kb = jax.random.split(key, 3)

    # Deterministic synthetic parameters (PyTorch Conv2d weight layout:
    # (out_channels, in_channels // groups, 1, 1)).
    fan_in = in_per_group * 1 * 1
    bound = 1.0 / (fan_in ** 0.5)
    weight = jax.random.uniform(kw, (out_channels, in_per_group, 1, 1),
                                dtype=jnp.float32, minval=-bound, maxval=bound)
    bias = jax.random.uniform(kb, (out_channels,),
                              dtype=jnp.float32, minval=-bound, maxval=bound)

    # Input: N=2, C=8, H=W=16 (NCHW, as PyTorch would feed it).
    x = jax.random.normal(kx, (2, in_channels, 16, 16), dtype=jnp.float32)

    out = restr2d_forward(x, weight, bias, sg)
    out = jax.block_until_ready(out)

    ref = _reference_forward(x, weight, bias, sg)
    assert out.shape == (2, out_channels, 16, 16)
    assert jnp.allclose(out, ref, atol=1e-5, rtol=1e-5)

    print("KERNEL_OK")
</pallas_src>

<mosaic_0001>
module attributes {stable_mosaic.version = 11 : i64} {
  func.func @_restr_kernel(%arg0: i32, %arg1: i32, %arg2: i32, %arg3: memref<1x1x4x256xf32, #tpu.memory_space<vmem>>, %arg4: memref<1x2x4xf32, #tpu.memory_space<vmem>>, %arg5: memref<1x2x1xf32, #tpu.memory_space<vmem>>, %arg6: memref<1x1x2x256xf32, #tpu.memory_space<vmem>>) attributes {dimension_semantics = [#tpu.dimension_semantics<parallel>, #tpu.dimension_semantics<parallel>, #tpu.dimension_semantics<parallel>], iteration_bounds = array<i64: 2, 2, 1>, scalar_prefetch = 0 : i64, scratch_operands = 0 : i64, tpu.core_type = #tpu.core_type<tc>, window_params = [{transform_indices = @transform_0, window_bounds = array<i64: 1, 1, 4, 256>}, {transform_indices = @transform_1, window_bounds = array<i64: 1, 2, 4>}, {transform_indices = @transform_2, window_bounds = array<i64: 1, 2, 1>}, {transform_indices = @transform_3, window_bounds = array<i64: 1, 1, 2, 256>}]} {
    %c0 = arith.constant 0 : index
    %c0_0 = arith.constant 0 : index
    %c0_1 = arith.constant 0 : index
    %c0_2 = arith.constant 0 : index
    %0 = vector.load %arg3[%c0, %c0_0, %c0_1, %c0_2] : memref<1x1x4x256xf32, #tpu.memory_space<vmem>>, vector<1x1x4x256xf32>
    %1 = vector.shape_cast %0 : vector<1x1x4x256xf32> to vector<4x256xf32>
    %c0_3 = arith.constant 0 : index
    %c0_4 = arith.constant 0 : index
    %c0_5 = arith.constant 0 : index
    %2 = vector.load %arg4[%c0_3, %c0_4, %c0_5] : memref<1x2x4xf32, #tpu.memory_space<vmem>>, vector<1x2x4xf32>
    %3 = vector.shape_cast %2 : vector<1x2x4xf32> to vector<2x4xf32>
    %c0_6 = arith.constant 0 : index
    %c0_7 = arith.constant 0 : index
    %c0_8 = arith.constant 0 : index
    %4 = vector.load %arg5[%c0_6, %c0_7, %c0_8] : memref<1x2x1xf32, #tpu.memory_space<vmem>>, vector<1x2x1xf32>
    %5 = vector.shape_cast %4 : vector<1x2x1xf32> to vector<2x1xf32>
    %6 = vector.shape_cast %5 : vector<2x1xf32> to vector<2x1xf32>
    %7 = vector.broadcast %6 : vector<2x1xf32> to vector<2x256xf32>
    %8 = vector.extract_strided_slice %3 {offsets = [0, 0], sizes = [2, 1], strides = [1, 1]} : vector<2x4xf32> to vector<2x1xf32>
    %9 = vector.extract_strided_slice %1 {offsets = [0, 0], sizes = [1, 256], strides = [1, 1]} : vector<4x256xf32> to vector<1x256xf32>
    %10 = vector.broadcast %8 : vector<2x1xf32> to vector<2x256xf32>
    %11 = vector.broadcast %9 : vector<1x256xf32> to vector<2x256xf32>
    %12 = arith.mulf %10, %11 : vector<2x256xf32>
    %13 = arith.addf %7, %12 : vector<2x256xf32>
    %14 = vector.extract_strided_slice %3 {offsets = [0, 1], sizes = [2, 1], strides = [1, 1]} : vector<2x4xf32> to vector<2x1xf32>
    %15 = vector.extract_strided_slice %1 {offsets = [1, 0], sizes = [1, 256], strides = [1, 1]} : vector<4x256xf32> to vector<1x256xf32>
    %16 = vector.broadcast %14 : vector<2x1xf32> to vector<2x256xf32>
    %17 = vector.broadcast %15 : vector<1x256xf32> to vector<2x256xf32>
    %18 = arith.mulf %16, %17 : vector<2x256xf32>
    %19 = arith.addf %13, %18 : vector<2x256xf32>
    %20 = vector.extract_strided_slice %3 {offsets = [0, 2], sizes = [2, 1], strides = [1, 1]} : vector<2x4xf32> to vector<2x1xf32>
    %21 = vector.extract_strided_slice %1 {offsets = [2, 0], sizes = [1, 256], strides = [1, 1]} : vector<4x256xf32> to vector<1x256xf32>
    %22 = vector.broadcast %20 : vector<2x1xf32> to vector<2x256xf32>
    %23 = vector.broadcast %21 : vector<1x256xf32> to vector<2x256xf32>
    %24 = arith.mulf %22, %23 : vector<2x256xf32>
    %25 = arith.addf %19, %24 : vector<2x256xf32>
    %26 = vector.extract_strided_slice %3 {offsets = [0, 3], sizes = [2, 1], strides = [1, 1]} : vector<2x4xf32> to vector<2x1xf32>
    %27 = vector.extract_strided_slice %1 {offsets = [3, 0], sizes = [1, 256], strides = [1, 1]} : vector<4x256xf32> to vector<1x256xf32>
    %28 = vector.broadcast %26 : vector<2x1xf32> to vector<2x256xf32>
    %29 = vector.broadcast %27 : vector<1x256xf32> to vector<2x256xf32>
    %30 = arith.mulf %28, %29 : vector<2x256xf32>
    %31 = arith.addf %25, %30 : vector<2x256xf32>
    %c0_9 = arith.constant 0 : index
    %c0_10 = arith.constant 0 : index
    %c0_11 = arith.constant 0 : index
    %c0_12 = arith.constant 0 : index
    %32 = vector.load %arg6[%c0_9, %c0_10, %c0_11, %c0_12] : memref<1x1x2x256xf32, #tpu.memory_space<vmem>>, vector<1x1x2x256xf32>
    %33 = vector.shape_cast %32 : vector<1x1x2x256xf32> to vector<2x256xf32>
    %34 = vector.shape_cast %31 : vector<2x256xf32> to vector<1x1x2x256xf32>
    tpu.vector_store %arg6[%c0_9, %c0_10, %c0_11, %c0_12], %34 {strides = array<i32>} : memref<1x1x2x256xf32, #tpu.memory_space<vmem>>, vector<1x1x2x256xf32>,
    return
  }
  func.func @transform_0(%arg0: i32, %arg1: i32, %arg2: i32) -> (i32, i32, i32, i32) {
    %c0_i32 = arith.constant 0 : i32
    %c0_i32_0 = arith.constant 0 : i32
    return %arg0, %arg1, %c0_i32, %arg2 : i32, i32, i32, i32
  }
  func.func @transform_1(%arg0: i32, %arg1: i32, %arg2: i32) -> (i32, i32, i32) {
    %c0_i32 = arith.constant 0 : i32
    %c0_i32_0 = arith.constant 0 : i32
    %c0_i32_1 = arith.constant 0 : i32
    return %arg1, %c0_i32, %c0_i32_0 : i32, i32, i32
  }
  func.func @transform_2(%arg0: i32, %arg1: i32, %arg2: i32) -> (i32, i32, i32) {
    %c0_i32 = arith.constant 0 : i32
    %c0_i32_0 = arith.constant 0 : i32
    %c0_i32_1 = arith.constant 0 : i32
    return %arg1, %c0_i32, %c0_i32_0 : i32, i32, i32
  }
  func.func @transform_3(%arg0: i32, %arg1: i32, %arg2: i32) -> (i32, i32, i32, i32) {
    %c0_i32 = arith.constant 0 : i32
    %c0_i32_0 = arith.constant 0 : i32
    return %arg0, %arg1, %c0_i32, %arg2 : i32, i32, i32, i32
  }
}

</mosaic_0001>

<llo_original>
// kernel: tpu_custom_call.1
$region0: #{tpu_custom_call.1}
  #allocation0 [shape = 'u32[]', space=smem, size = 0x4, offset = 0x4, fixed_abs, tag = 'smem constant byte address 0x4 - core index']
  #allocation1 [shape = 'u32[144,128]{1,0:T(1,128)}', space=vmem, size = 0x12000, scoped, tag = 'internal scratch']
  %s0 = inlined_call_operand.hbm [shape: f32[2,2,4,256], index: 0, kind: input, shape index: {}]
  %s1 = inlined_call_operand.vmem [shape: f32[2,2,4], index: 1, kind: input, shape index: {}]
  %s2 = inlined_call_operand.vmem [shape: f32[2,2,1], index: 2, kind: input, shape index: {}]
  %s3 = inlined_call_operand.hbm [shape: f32[2,2,2,256], index: 3, kind: output, shape index: {}]
  %s4 = sld [smem:[#allocation0]]
  $region49: #{tpu_custom_call.1} parent=0
    _
  %s6 = ssub.s32 1, %s4
  %s7 = scalar_select 0, %s6, %s4
  $region1: #{tpu_custom_call.1} parent=0
    #allocation2 [shape = 'u8[8192]{0}', space=vmem, size = 0x2000, scoped, tag = 'input window, operand 0']
    #allocation3 [shape = 's32[2]{0}', space=sflag, size = 0x8, scoped, tag = 'scoped memory for tpu_custom_call.1']
    #allocation4 [shape = 's32[2]{0}', space=sflag, size = 0x8, scoped, tag = 'scoped memory for tpu_custom_call.1']
    #allocation5 [shape = 'u8[4096]{0}', space=vmem, size = 0x1000, scoped, tag = 'output window, operand 0']
    %8 = vsyncpa [#allocation3], 0
    %s9 = scalar_lea.sflag [#allocation3], 1
    %10 = vsyncpa %s9, 0
    %11 = vsyncpa [#allocation4], 0
    %s12 = scalar_lea.sflag [#allocation4], 1
    %13 = vsyncpa %s12, 0
    loop: start=0, step=1, limit=6
    $region2: #{tpu_custom_call.1} parent=1 // loop_pre_header
      _
    $region3: #{tpu_custom_call.1} parent=1 // loop_header
      %s15 = sphi 0, %s19
      %p16 = scmp.ge.s32.totalorder %s15, 6
      %s22 = sphi 0, %s41
      %s23 = sphi 0, %s37
      %s24 = sphi 0, %s33
      %s25 = sphi 0, %s22
      %s26 = sphi 0, %s23
      %s27 = sphi 0, %s24
      %s28 = sphi 0, %s25
      %s29 = sphi 0, %s26
      %s30 = sphi 0, %s27
      %s48 = sphi 0, %s50
      %s51 = sphi 0, %s48
      %s52 = sphi 0, %s51
      %s68 = sphi 0, %s52
      %s74 = sphi 0, %s76
      %s77 = sphi 0, %s74
      %s78 = sphi 0, %s77
      %s94 = sphi 0, %s78
      %s100 = sphi 0, %s102
      %s103 = sphi 0, %s100
      %s104 = sphi 0, %s103
      %s120 = sphi 0, %s104
      %s130 = sphi 0, %s132
      %s133 = sphi 0, %s130
      %s134 = sphi 0, %s133
      %s150 = sphi 0, %s134
    $region4: #{tpu_custom_call.1} parent=1 // loop_header_branch
      %18 = sbr.rel (%p16) target = $region8
    $region5: #{tpu_custom_call.1} parent=1 // loop_body
      %s20 = ssub.s32 %s15, 1
      %s21 = ssub.s32 %s15, 2
      %s31 = sadd.s32 1, %s24
      %p32 = scmp.ge.s32.totalorder %s31, 1
      %s33 = scalar_select %p32, 0, %s31
      %s34 = sadd.s32 1, %s23
      %s35 = scalar_select %p32, %s34, %s23
      %p36 = scmp.ge.s32.totalorder %s35, 2
      %s37 = scalar_select %p36, 0, %s35
      %s38 = sadd.s32 1, %s22
      %s39 = scalar_select %p36, %s38, %s22
      %p40 = scmp.ge.s32.totalorder %s39, 2
      %s41 = scalar_select %p40, 0, %s39
      %s42 = ssub.s32 %s22, %s41
      %s43 = ssub.s32 %s23, %s37
      %s44 = sor.u32 %s42, %s43
      %s45 = ssub.s32 %s24, %s33
      %s46 = sor.u32 %s44, %s45
      %p47 = scmp.eq.s32.totalorder %s46, 0
      %s49 = sadd.s32 %s48, 1
      %s50 = scalar_select %p47, %s48, %s49
      %p53 = pneg %p47
      %p54 = scmp.eq.s32.totalorder %s15, 3
      %p55 = por %p53, %p54
      %p56 = scmp.ne.s32.totalorder %s48, %s51
      %p57 = scmp.eq.s32.totalorder %s15, 0
      %p58 = por %p56, %p57
      %p59 = scmp.ne.s32.totalorder %s48, %s51
      %p60 = scmp.eq.s32.totalorder %s20, 3
      %p61 = por %p59, %p60
      %p62 = scmp.ne.s32.totalorder %s51, %s52
      %p63 = scmp.eq.s32.totalorder %s20, 0
      %p64 = por %p62, %p63
      %p65 = scmp.ne.s32.totalorder %s51, %s52
      %p66 = scmp.eq.s32.totalorder %s21, 3
      %p67 = por %p65, %p66
      %p69 = scmp.ne.s32.totalorder %s52, %s68
      %p70 = scmp.eq.s32.totalorder %s21, 0
      %p71 = por %p69, %p70
      %s72 = ssub.s32 %s23, %s37
      %p73 = scmp.eq.s32.totalorder %s72, 0
      %s75 = sadd.s32 %s74, 1
      %s76 = scalar_select %p73, %s74, %s75
      %p79 = pneg %p73
      %p80 = scmp.eq.s32.totalorder %s15, 3
      %p81 = por %p79, %p80
      %p82 = scmp.ne.s32.totalorder %s74, %s77
      %p83 = scmp.eq.s32.totalorder %s15, 0
      %p84 = por %p82, %p83
      %p85 = scmp.ne.s32.totalorder %s74, %s77
      %p86 = scmp.eq.s32.totalorder %s20, 3
      %p87 = por %p85, %p86
      %p88 = scmp.ne.s32.totalorder %s77, %s78
      %p89 = scmp.eq.s32.totalorder %s20, 0
      %p90 = por %p88, %p89
      %p91 = scmp.ne.s32.totalorder %s77, %s78
      %p92 = scmp.eq.s32.totalorder %s21, 3
      %p93 = por %p91, %p92
      %p95 = scmp.ne.s32.totalorder %s78, %s94
      %p96 = scmp.eq.s32.totalorder %s21, 0
      %p97 = por %p95, %p96
      %s98 = ssub.s32 %s23, %s37
      %p99 = scmp.eq.s32.totalorder %s98, 0
      %s101 = sadd.s32 %s100, 1
      %s102 = scalar_select %p99, %s100, %s101
      %p105 = pneg %p99
      %p106 = scmp.eq.s32.totalorder %s15, 3
      %p107 = por %p105, %p106
      %p108 = scmp.ne.s32.totalorder %s100, %s103
      %p109 = scmp.eq.s32.totalorder %s15, 0
      %p110 = por %p108, %p109
      %p111 = scmp.ne.s32.totalorder %s100, %s103
      %p112 = scmp.eq.s32.totalorder %s20, 3
      %p113 = por %p111, %p112
      %p114 = scmp.ne.s32.totalorder %s103, %s104
      %p115 = scmp.eq.s32.totalorder %s20, 0
      %p116 = por %p114, %p115
      %p117 = scmp.ne.s32.totalorder %s103, %s104
      %p118 = scmp.eq.s32.totalorder %s21, 3
      %p119 = por %p117, %p118
      %p121 = scmp.ne.s32.totalorder %s104, %s120
      %p122 = scmp.eq.s32.totalorder %s21, 0
      %p123 = por %p121, %p122
      %s124 = ssub.s32 %s22, %s41
      %s125 = ssub.s32 %s23, %s37
      %s126 = sor.u32 %s124, %s125
      %s127 = ssub.s32 %s24, %s33
      %s128 = sor.u32 %s126, %s127
      %p129 = scmp.eq.s32.totalorder %s128, 0
      %s131 = sadd.s32 %s130, 1
      %s132 = scalar_select %p129, %s130, %s131
      %p135 = pneg %p129
      %p136 = scmp.eq.s32.totalorder %s15, 3
      %p137 = por %p135, %p136
      %p138 = scmp.ne.s32.totalorder %s130, %s133
      %p139 = scmp.eq.s32.totalorder %s15, 0
      %p140 = por %p138, %p139
      %p141 = scmp.ne.s32.totalorder %s130, %s133
      %p142 = scmp.eq.s32.totalorder %s20, 3
      %p143 = por %p141, %p142
      %p144 = scmp.ne.s32.totalorder %s133, %s134
      %p145 = scmp.eq.s32.totalorder %s20, 0
      %p146 = por %p144, %p145
      %p147 = scmp.ne.s32.totalorder %s133, %s134
      %p148 = scmp.eq.s32.totalorder %s21, 3
      %p149 = por %p147, %p148
      %p151 = scmp.ne.s32.totalorder %s134, %s150
      %p152 = scmp.eq.s32.totalorder %s21, 0
      %p153 = por %p151, %p152
      %p154 = scmp.le.s32.totalorder 1, %s15
      %p155 = scmp.lt.s32.totalorder %s15, 5
      %p156 = pnand %p154, %p155
      %p157 = pneg %p156
      // Predicated region
      $region9: #{tpu_custom_call.1} parent=5 // pred_check
        _
      $region10: #{tpu_custom_call.1} parent=5 // pred_check_branch
        %159 = sbr.rel (%p156) target = $region12
      $region11: #{tpu_custom_call.1} parent=5 // pred_region
        %s160 = ssub.s32 %s15, 1
      $region12: #{tpu_custom_call.1} parent=5 // pred_fallthru
        _
      %p161 = scmp.lt.s32.totalorder %s15, 4
      // Predicated region
      $region13: #{tpu_custom_call.1} parent=5 // pred_check
        %p162 = pneg %p161
      $region14: #{tpu_custom_call.1} parent=5 // pred_check_branch
        %164 = sbr.rel (%p162) target = $region16
      $region15: #{tpu_custom_call.1} parent=5 // pred_region
        // Predicated region
        $region17: #{tpu_custom_call.1} parent=15 // pred_check
          %p165 = pneg %p58
        $region18: #{tpu_custom_call.1} parent=15 // pred_check_branch
          %167 = sbr.rel (%p165) target = $region20
        $region19: #{tpu_custom_call.1} parent=15 // pred_region
          %s168 = sand.u32 %s48, 1
          %s169 = scalar_lea.sflag [#allocation3], %s168
          %s170 = sand.u32 %s48, 1
          %s171 = smul.addr %s170, 8
          %s172 = scalar_lea.vmem [#allocation2], %s171
          %s173 = smul.u32 2, %s24
          %s175 = ssub.s32 128, 128
          %176 = vsyncadd %s169, %s175
          %s177 = smul.addr %s23, 2
          %s178 = sadd.s32 %s173, %s177
          %s179 = smul.addr %s22, 4
          %s180 = sadd.s32 %s178, %s179
          %s181 = smul.addr %s180, 64
          %s182 = scalar_lea.hbm %s0, %s181
          %s184 = sshll.u32 %s172, 4
          %s185 = int_to_ptr.vmem [resolvable:$true] %s184
          %187 = dma.hbm_to_vmem [thread:$0]  %s182, 128, %s185, %s169
        $region20: #{tpu_custom_call.1} parent=15 // pred_fallthru
          _
        // Predicated region
        $region21: #{tpu_custom_call.1} parent=15 // pred_check
          %p188 = pneg %p84
        $region22: #{tpu_custom_call.1} parent=15 // pred_check_branch
          %190 = sbr.rel (%p188) target = $region24
        $region23: #{tpu_custom_call.1} parent=15 // pred_region
          %p191 = scmp.lt.s32.totalorder %s23, 1
          %s192 = scalar_select %p191, %s23, 1
          %s193 = smul.addr %s192, 2
          %s194 = scalar_lea.vmem %s1, %s193
        $region24: #{tpu_custom_call.1} parent=15 // pred_fallthru
          _
        // Predicated region
        $region25: #{tpu_custom_call.1} parent=15 // pred_check
          %p195 = pneg %p110
        $region26: #{tpu_custom_call.1} parent=15 // pred_check_branch
          %197 = sbr.rel (%p195) target = $region28
        $region27: #{tpu_custom_call.1} parent=15 // pred_region
          %p198 = scmp.lt.s32.totalorder %s23, 1
          %s199 = scalar_select %p198, %s23, 1
          %s200 = smul.addr %s199, 2
          %s201 = scalar_lea.vmem %s2, %s200
        $region28: #{tpu_custom_call.1} parent=15 // pred_fallthru
          _
      $region16: #{tpu_custom_call.1} parent=5 // pred_fallthru
        _
      %p202 = scmp.le.s32.totalorder 1, %s15
      %p203 = scmp.lt.s32.totalorder %s15, 5
      %p204 = pnand %p202, %p203
      %p205 = pneg %p204
      // Predicated region
      $region29: #{tpu_custom_call.1} parent=5 // pred_check
        _
      $region30: #{tpu_custom_call.1} parent=5 // pred_check_branch
        %207 = sbr.rel (%p204) target = $region32
      $region31: #{tpu_custom_call.1} parent=5 // pred_region
        %s208 = ssub.s32 %s15, 1
        %s209 = sand.u32 %s51, 1
        %s210 = scalar_lea.sflag [#allocation3], %s209
        %s211 = sand.u32 %s51, 1
        %s212 = smul.addr %s211, 8
        %s213 = scalar_lea.vmem [#allocation2], %s212
        // Predicated region
        $region33: #{tpu_custom_call.1} parent=31 // pred_check
          %p214 = pneg %p64
        $region34: #{tpu_custom_call.1} parent=31 // pred_check_branch
          %216 = sbr.rel (%p214) target = $region36
        $region35: #{tpu_custom_call.1} parent=31 // pred_region
          %217 = dma.done %s210, 128
        $region36: #{tpu_custom_call.1} parent=31 // pred_fallthru
          _
        %s218 = sand.u32 %s51, 1
        %s219 = scalar_lea.sflag [#allocation3], %s218
        %s220 = sand.u32 %s51, 1
        %s221 = smul.addr %s220, 8
        %s222 = scalar_lea.vmem [#allocation2], %s221
        %p223 = pneg %p64
        %p224 = pneg %p61
        %p225 = scmp.lt.s32.totalorder %s26, 1
        %s226 = scalar_select %p225, %s26, 1
        %s227 = smul.addr %s226, 2
        %s228 = scalar_lea.vmem %s1, %s227
        %p229 = pneg %p90
        %p230 = pneg %p87
        %p231 = scmp.lt.s32.totalorder %s26, 1
        %s232 = scalar_select %p231, %s26, 1
        %s233 = smul.addr %s232, 2
        %s234 = scalar_lea.vmem %s2, %s233
        %p235 = pneg %p116
        %p236 = pneg %p113
        %p237 = pneg %p146
        %p238 = pneg %p143
        %s239 = sand.u32 %s133, 1
        %s240 = scalar_lea.sflag [#allocation4], %s239
        %s241 = sand.u32 %s133, 1
        %s242 = smul.addr %s241, 4
        %s243 = scalar_lea.vmem [#allocation5], %s242
        %s244 = smul.u32 2, %s27
        %p245 = scmp.lt.s32.totalorder %s26, 1
        %s246 = scalar_select %p245, %s26, 1
        %s247 = smul.addr %s246, 2
        %s248 = scalar_lea.vmem %s1, %s247
        %p249 = scmp.lt.s32.totalorder %s26, 1
        %s250 = scalar_select %p249, %s26, 1
        %s251 = smul.addr %s250, 2
        %s252 = scalar_lea.vmem %s2, %s251
        %s253 = smul.u32 2, %s27
        %v254 = vld [vmem:[%s213] sm:$0xff]
        %v255 = vld [vmem:[%s248] sm:$0x3]
        %v256 = vld [vmem:[%s252] sm:$0x3]
        %258 = vset.pattern.permute.xlu0 0
        %259 = vperm.xlu0 %258, %v256
        %v260 = vpop.permute.xlu0 %259
        %263 = vset.pattern.permute.xlu0 0
        %264 = vperm.xlu0 %263, %v255
        %v265 = vpop.permute.xlu0 %264
        %v268 = vlaneseq
        %v269 = vshrl.u32 %v268, 7
        %v270 = vsub.s32 0, %v269
        %v271 = vrot.slane %v254, %v270
        %v272 = vlaneseq
        %v273 = vshrl.u32 %v272, 7
        %v274 = vsub.s32 4, %v273
        %v275 = vrot.slane %v254, %v274
        %v278 = vlaneseq
        %v279 = vshrl.u32 %v278, 7
        %v280 = vsub.s32 0, %v279
        %v281 = vrot.slane %v271, %v280
        %v282 = vlaneseq
        %v283 = vshrl.u32 %v282, 7
        %v284 = vsub.s32 0, %v283
        %v285 = vrot.slane %v275, %v284
        %v286 = vmul.f32 %v265, %v281
        %v287 = vmul.f32 %v265, %v285
        %v288 = vadd.f32 %v260, %v286
        %v289 = vadd.f32 %v260, %v287
        %290 = vset.pattern.permute.xlu0 1
        %291 = vperm.xlu0 %290, %v255
        %v292 = vpop.permute.xlu0 %291
        %v294 = vlaneseq
        %v295 = vshrl.u32 %v294, 7
        %v296 = vsub.s32 1, %v295
        %v297 = vrot.slane %v254, %v296
        %v298 = vlaneseq
        %v299 = vshrl.u32 %v298, 7
        %v300 = vsub.s32 5, %v299
        %v301 = vrot.slane %v254, %v300
        %v304 = vlaneseq
        %v305 = vshrl.u32 %v304, 7
        %v306 = vsub.s32 1, %v305
        %v307 = vrot.slane %v297, %v306
        %v308 = vlaneseq
        %v309 = vshrl.u32 %v308, 7
        %v310 = vsub.s32 1, %v309
        %v311 = vrot.slane %v301, %v310
        %v312 = vmul.f32 %v292, %v307
        %v313 = vmul.f32 %v292, %v311
        %v314 = vadd.f32 %v288, %v312
        %v315 = vadd.f32 %v289, %v313
        %316 = vset.pattern.permute.xlu0 2
        %317 = vperm.xlu0 %316, %v255
        %v318 = vpop.permute.xlu0 %317
        %v320 = vlaneseq
        %v321 = vshrl.u32 %v320, 7
        %v322 = vsub.s32 2, %v321
        %v323 = vrot.slane %v254, %v322
        %v324 = vlaneseq
        %v325 = vshrl.u32 %v324, 7
        %v326 = vsub.s32 6, %v325
        %v327 = vrot.slane %v254, %v326
        %v330 = vlaneseq
        %v331 = vshrl.u32 %v330, 7
        %v332 = vsub.s32 2, %v331
        %v333 = vrot.slane %v323, %v332
        %v334 = vlaneseq
        %v335 = vshrl.u32 %v334, 7
        %v336 = vsub.s32 2, %v335
        %v337 = vrot.slane %v327, %v336
        %v338 = vmul.f32 %v318, %v333
        %v339 = vmul.f32 %v318, %v337
        %v340 = vadd.f32 %v314, %v338
        %v341 = vadd.f32 %v315, %v339
        %342 = vset.pattern.permute.xlu0 3
        %343 = vperm.xlu0 %342, %v255
        %v344 = vpop.permute.xlu0 %343
        %v346 = vlaneseq
        %v347 = vshrl.u32 %v346, 7
        %v348 = vsub.s32 3, %v347
        %v349 = vrot.slane %v254, %v348
        %v350 = vlaneseq
        %v351 = vshrl.u32 %v350, 7
        %v352 = vsub.s32 7, %v351
        %v353 = vrot.slane %v254, %v352
        %v356 = vlaneseq
        %v357 = vshrl.u32 %v356, 7
        %v358 = vsub.s32 3, %v357
        %v359 = vrot.slane %v349, %v358
        %v360 = vlaneseq
        %v361 = vshrl.u32 %v360, 7
        %v362 = vsub.s32 3, %v361
        %v363 = vrot.slane %v353, %v362
        %v364 = vmul.f32 %v344, %v359
        %v365 = vmul.f32 %v344, %v363
        %v366 = vadd.f32 %v340, %v364
        %v367 = vadd.f32 %v341, %v365
        %v370 = vcombine.low %v366, %v367
        %v372 = vunpack.c.l.s4 1983009808
        %v373 = vunpack.c.0.s8 %v372
        %v374 = vlaneseq
        %v375 = vshrl.u32 %v374, 7
        %v376 = vsub.s32 %v373, %v375
        %v377 = vrot.slane %v370, %v376
        %379 = vst [vmem:[%s243] sm:$0xf] %v377
        %s380 = sand.u32 %s133, 1
        %s381 = scalar_lea.sflag [#allocation4], %s380
        %s382 = sand.u32 %s133, 1
        %s383 = smul.addr %s382, 4
        %s384 = scalar_lea.vmem [#allocation5], %s383
        // Predicated region
        $region37: #{tpu_custom_call.1} parent=31 // pred_check
          %p385 = pneg %p143
        $region38: #{tpu_custom_call.1} parent=31 // pred_check_branch
          %387 = sbr.rel (%p385) target = $region40
        $region39: #{tpu_custom_call.1} parent=31 // pred_region
          %s388 = smul.u32 2, %s27
          %s390 = ssub.s32 64, 64
          %391 = vsyncadd %s381, %s390
          %s392 = smul.addr %s26, 2
          %s393 = sadd.s32 %s388, %s392
          %s394 = smul.addr %s25, 4
          %s395 = sadd.s32 %s393, %s394
          %s396 = smul.addr %s395, 32
          %s397 = scalar_lea.hbm %s3, %s396
          %s399 = sshll.u32 %s384, 4
          %s400 = int_to_ptr.vmem [resolvable:$true] %s399
          %402 = dma.vmem_to_hbm [thread:$0]  %s400, 64, %s397, %s381
        $region40: #{tpu_custom_call.1} parent=31 // pred_fallthru
          _
      $region32: #{tpu_custom_call.1} parent=5 // pred_fallthru
        _
      %p403 = scmp.le.s32.totalorder 2, %s15
      // Predicated region
      $region41: #{tpu_custom_call.1} parent=5 // pred_check
        %p404 = pneg %p403
      $region42: #{tpu_custom_call.1} parent=5 // pred_check_branch
        %406 = sbr.rel (%p404) target = $region44
      $region43: #{tpu_custom_call.1} parent=5 // pred_region
        %s407 = ssub.s32 %s15, 2
        // Predicated region
        $region45: #{tpu_custom_call.1} parent=43 // pred_check
          %p408 = pneg %p149
        $region46: #{tpu_custom_call.1} parent=43 // pred_check_branch
          %410 = sbr.rel (%p408) target = $region48
        $region47: #{tpu_custom_call.1} parent=43 // pred_region
          %s411 = sand.u32 %s134, 1
          %s412 = scalar_lea.sflag [#allocation4], %s411
          %s413 = sand.u32 %s134, 1
          %s414 = smul.addr %s413, 4
          %s415 = scalar_lea.vmem [#allocation5], %s414
          %416 = dma.done %s412, 64
        $region48: #{tpu_custom_call.1} parent=43 // pred_fallthru
          _
      $region44: #{tpu_custom_call.1} parent=5 // pred_fallthru
        _
    $region6: #{tpu_custom_call.1} parent=1 // loop_footer
      %s19 = sadd.s32 1, %s15
    $region7: #{tpu_custom_call.1} parent=1 // loop_footer_branch
      %14 = sbr.rel target = $region3
    $region8: #{tpu_custom_call.1} parent=1 // loop_exit
      _
    %417 = vsyncpa [#allocation3], 1
    %s418 = scalar_lea.sflag [#allocation3], 1
    %419 = vsyncpa %s418, 1
    %420 = vsyncpa [#allocation4], 1
    %s421 = scalar_lea.sflag [#allocation4], 1
    %422 = vsyncpa %s421, 1

</llo_original>
